<compile_context>
chip_gen: v7x
topology: tpu7x:2x2x1
jax: 0.10.0
libtpu: 0.0.40
codegen_flags: <defaults>
</compile_context>

<pallas_src>
import functools
import math

import jax
import jax.numpy as jnp
from jax.experimental import pallas as pl
from jax.experimental.pallas import tpu as pltpu

_LANE = 128


def _cdiv(a: int, b: int) -> int:
    return -(-a // b)


def _build_pe_table(max_seq_len: int, d_model: int) -> jnp.ndarray:
    """Sinusoidal table, identical math to the PyTorch __init__ loops.

    Note: the PyTorch source uses the *same* angle pos / 10000**(i/d_model) for both the
    sin (index i) and cos (index i+1) entries, which is what is reproduced here.
    """
    pos = jnp.arange(max_seq_len, dtype=jnp.float32)[:, None]      # (L, 1)
    i = jnp.arange(0, d_model, 2, dtype=jnp.float32)[None, :]      # (1, ceil(D/2))
    angle = pos / jnp.power(10000.0, i / float(d_model))            # (L, ceil(D/2))
    pe = jnp.zeros((max_seq_len, d_model), dtype=jnp.float32)
    pe = pe.at[:, 0::2].set(jnp.sin(angle))
    n_cos = d_model // 2                                            # i+1 < d_model guard
    pe = pe.at[:, 1::2].set(jnp.cos(angle[:, :n_cos]))
    return pe


def _target_tile_elems() -> int:
    """Per-buffer tile budget (in f32 elements), sized to the scoped-VMEM default."""
    try:
        kind = jax.devices()[0].device_kind.lower()
    except Exception:
        return 512 * 1024
    if "v6" in kind or "v7" in kind:
        return 1024 * 1024   # ~4 MiB/buffer; total footprint ~24 MiB < 32 MiB default
    return 512 * 1024        # v5e & unknown: ~2 MiB/buffer; ~12 MiB < 16 MiB default


def _sublane_quantum(dtype) -> int:
    """Rows per packed sublane group: 8 for 4-byte, 16 for 2-byte, 32 for 1-byte dtypes."""
    return max(8, 32 // jnp.dtype(dtype).itemsize)


# --------------------------------------------------------------------------------------
# Kernels
# --------------------------------------------------------------------------------------

def _pe_kernel_3d(x_ref, pe_ref, o_ref, *, scale: float):
    # x_ref/o_ref: (TB, TR, D) in the I/O dtype; pe_ref: (TR, D) f32.
    x = x_ref[...].astype(jnp.float32)
    o_ref[...] = (x * jnp.float32(scale) + pe_ref[...][None, :, :]).astype(o_ref.dtype)
    # TODO(synk): nn.Dropout(p=0.1) is identity in eval mode; training-mode dropout would
    # use pltpu.prng_seed + pltpu.prng_random_bits inside this kernel.


def _pe_kernel_2d(x_ref, pe_ref, o_ref, *, scale: float):
    # Fallback flattened layout: x_ref/o_ref (TB, TL); pe_ref (1, TL) f32.
    x = x_ref[...].astype(jnp.float32)
    o_ref[...] = (x * jnp.float32(scale) + pe_ref[...]).astype(o_ref.dtype)


# --------------------------------------------------------------------------------------
# Wrappers
# --------------------------------------------------------------------------------------

def _pos_enc_dense(x, pe_table, scale, quantum, budget_elems, cost):
    """Primary path: (B, S, D) blocks (TB, TR, D) with TR | S and TR % quantum == 0."""
    B, S, D = x.shape

    # Position tile TR: a multiple of the sublane quantum that divides S (so every block
    # is aligned to one sequence and PE rows line up), as large as the budget allows.
    candidates = [t for t in range(quantum, S + 1, quantum) if S % t == 0]
    fitting = [t for t in candidates if t * D <= budget_elems]
    TR = max(fitting) if fitting else candidates[0]
    # Then grow the batch tile to the remaining budget (tile coupling, review item 1).
    TB = max(1, min(B, budget_elems // (TR * D)))

    n_pos_blocks = S // TR
    n_batch_blocks = _cdiv(B, TB)

    # v7x megacore: prefer >= 2 grid blocks so both TensorCores stream.
    if n_pos_blocks * n_batch_blocks < 2:
        if B >= 2:
            TB = (B + 1) // 2                      # leading block dim: any size is legal
            n_batch_blocks = _cdiv(B, TB)
        else:
            smaller = [t for t in candidates if t <= S // 2]
            if smaller:
                TR = max(smaller)
                n_pos_blocks = S // TR

    grid = (n_pos_blocks, n_batch_blocks)          # batch innermost -> PE tile resident

    kernel = functools.partial(_pe_kernel_3d, scale=scale)
    return pl.pallas_call(
        kernel,
        out_shape=jax.ShapeDtypeStruct((B, S, D), x.dtype),
        grid_spec=pltpu.PrefetchScalarGridSpec(
            num_scalar_prefetch=0,
            grid=grid,
            in_specs=[
                pl.BlockSpec((TB, TR, D), lambda pi, bi: (bi, pi, 0)),
                # Full PE table passed as-is (no per-call slice); only rows < S touched.
                pl.BlockSpec((TR, D), lambda pi, bi: (pi, 0)),
            ],
            out_specs=pl.BlockSpec((TB, TR, D), lambda pi, bi: (bi, pi, 0)),
        ),
        compiler_params=pltpu.CompilerParams(
            dimension_semantics=("parallel", "parallel"),
        ),
        cost_estimate=cost,
    )(x, pe_table)


def _pos_enc_flat(x, pe_table, scale, quantum, budget_elems, cost):
    """Fallback: flatten (S, D) into one lane axis when S is not quantum-aligned."""
    B, S, D = x.shape
    L = S * D
    x_flat = x.reshape(B, L)

    # Batch tile first, then let the lane tile grow to the budget (review item 1).
    tb_raw = min(B, max(quantum, budget_elems // max(L, 1)))
    if tb_raw >= B:
        TB = B                                             # full dim -> always legal
    else:
        TB = min(B, max(quantum, (tb_raw // quantum) * quantum))
    tl_cap = max(_LANE, budget_elems // max(TB, 1))
    TL = L if L <= tl_cap else (tl_cap // _LANE) * _LANE

    n_lane_blocks = _cdiv(L, TL)
    n_batch_blocks = _cdiv(B, TB)

    # v7x megacore: split the lane axis (stays 128-aligned) when the grid is degenerate.
    if n_lane_blocks * n_batch_blocks < 2 and L >= 2 * _LANE:
        TL = max(_LANE, ((L // 2) // _LANE) * _LANE)
        n_lane_blocks = _cdiv(L, TL)

    # PE: reuse the full flattened table (free contiguous reshape, no HBM copy) whenever
    # the lane tile is 128-aligned; otherwise (TL == L, not 128-aligned) slice once.
    if TL % _LANE == 0:
        pe_flat = pe_table.reshape(1, -1)
    else:
        pe_flat = pe_table[:S, :].reshape(1, L)

    grid = (n_lane_blocks, n_batch_blocks)                 # batch innermost -> PE resident

    kernel = functools.partial(_pe_kernel_2d, scale=scale)
    out_flat = pl.pallas_call(
        kernel,
        out_shape=jax.ShapeDtypeStruct((B, L), x.dtype),
        grid_spec=pltpu.PrefetchScalarGridSpec(
            num_scalar_prefetch=0,
            grid=grid,
            in_specs=[
                pl.BlockSpec((TB, TL), lambda li, bi: (bi, li)),
                pl.BlockSpec((1, TL), lambda li, bi: (0, li)),   # depends only on li
            ],
            out_specs=pl.BlockSpec((TB, TL), lambda li, bi: (bi, li)),
        ),
        compiler_params=pltpu.CompilerParams(
            dimension_semantics=("parallel", "parallel"),
        ),
        cost_estimate=cost,
    )(x_flat, pe_flat)
    return out_flat.reshape(B, S, D)


def positional_encoder(x: jnp.ndarray, pe_table: jnp.ndarray) -> jnp.ndarray:
    """x: (B, S, D); pe_table: (max_seq_len, D) float32. Returns x*sqrt(D) + pe[:S]."""
    B, S, D = x.shape
    if S > pe_table.shape[0]:
        raise ValueError(f"seq_len {S} exceeds max_seq_len {pe_table.shape[0]}")
    scale = math.sqrt(float(D))

    budget_elems = _target_tile_elems()
    itemsize = x.dtype.itemsize
    quantum = _sublane_quantum(x.dtype)                    # dtype-aware sublane quantum
    if S % quantum != 0 and S % 8 == 0:
        quantum = 8                                        # still legal, slightly less packed

    cost = pl.CostEstimate(
        flops=2 * B * S * D,                               # one mul + one add per element
        transcendentals=0,
        bytes_accessed=(B * S * D * itemsize)              # x in
        + (S * D * pe_table.dtype.itemsize)                # pe (read once)
        + (B * S * D * itemsize),                          # out
    )

    if S % quantum == 0:
        return _pos_enc_dense(x, pe_table, scale, quantum, budget_elems, cost)
    return _pos_enc_flat(x, pe_table, scale, quantum, budget_elems, cost)


if __name__ == "__main__":
    # Small shapes consistent with the module: batch=2, seq=8, d_model=32.
    batch, seq_len, d_model = 2, 8, 32
    max_seq_len = 80

    key = jax.random.PRNGKey(0)
    x = jax.random.normal(key, (batch, seq_len, d_model), dtype=jnp.float32)
    pe_table = _build_pe_table(max_seq_len, d_model)

    out = jax.block_until_ready(positional_encoder(x, pe_table))
    ref = x * jnp.float32(math.sqrt(float(d_model))) + pe_table[:seq_len][None, :, :]
    assert out.shape == (batch, seq_len, d_model)
    assert jnp.allclose(out, ref, atol=1e-5, rtol=1e-5)

    # Also exercise the fallback path (seq not a multiple of 8) incl. ragged lane blocks.
    seq2 = 10
    x2 = jax.random.normal(jax.random.PRNGKey(1), (batch, seq2, d_model), dtype=jnp.float32)
    out2 = jax.block_until_ready(positional_encoder(x2, pe_table))
    ref2 = x2 * jnp.float32(math.sqrt(float(d_model))) + pe_table[:seq2][None, :, :]
    assert jnp.allclose(out2, ref2, atol=1e-5, rtol=1e-5)

    print("KERNEL_OK")
</pallas_src>

<mosaic_0001>
module attributes {stable_mosaic.version = 11 : i64} {
  func.func @_pe_kernel_3d(%arg0: i32, %arg1: i32, %arg2: memref<1x8x32xf32, #tpu.memory_space<vmem>>, %arg3: memref<8x32xf32, #tpu.memory_space<vmem>>, %arg4: memref<1x8x32xf32, #tpu.memory_space<vmem>>) attributes {dimension_semantics = [#tpu.dimension_semantics<parallel>, #tpu.dimension_semantics<parallel>], iteration_bounds = array<i64: 1, 2>, scalar_prefetch = 0 : i64, scratch_operands = 0 : i64, tpu.core_type = #tpu.core_type<tc>, window_params = [{transform_indices = @transform_0, window_bounds = array<i64: 1, 8, 32>}, {transform_indices = @transform_1, window_bounds = array<i64: 8, 32>}, {transform_indices = @transform_2, window_bounds = array<i64: 1, 8, 32>}]} {
    %c0 = arith.constant 0 : index
    %c0_0 = arith.constant 0 : index
    %c0_1 = arith.constant 0 : index
    %0 = vector.load %arg2[%c0, %c0_0, %c0_1] : memref<1x8x32xf32, #tpu.memory_space<vmem>>, vector<1x8x32xf32>
    %cst = arith.constant 5.65685415 : f32
    %1 = vector.broadcast %cst : f32 to vector<1x8x32xf32>
    %2 = arith.mulf %0, %1 : vector<1x8x32xf32>
    %c0_2 = arith.constant 0 : index
    %c0_3 = arith.constant 0 : index
    %3 = vector.load %arg3[%c0_2, %c0_3] : memref<8x32xf32, #tpu.memory_space<vmem>>, vector<8x32xf32>
    %4 = vector.shape_cast %3 : vector<8x32xf32> to vector<1x8x32xf32>
    %5 = arith.addf %2, %4 : vector<1x8x32xf32>
    %c0_4 = arith.constant 0 : index
    %c0_5 = arith.constant 0 : index
    %c0_6 = arith.constant 0 : index
    %6 = vector.load %arg4[%c0_4, %c0_5, %c0_6] : memref<1x8x32xf32, #tpu.memory_space<vmem>>, vector<1x8x32xf32>
    tpu.vector_store %arg4[%c0_4, %c0_5, %c0_6], %5 {strides = array<i32>} : memref<1x8x32xf32, #tpu.memory_space<vmem>>, vector<1x8x32xf32>,
    return
  }
  func.func @transform_0(%arg0: i32, %arg1: i32) -> (i32, i32, i32) {
    %c0_i32 = arith.constant 0 : i32
    %c0_i32_0 = arith.constant 0 : i32
    return %arg1, %arg0, %c0_i32 : i32, i32, i32
  }
  func.func @transform_1(%arg0: i32, %arg1: i32) -> (i32, i32) {
    %c0_i32 = arith.constant 0 : i32
    %c0_i32_0 = arith.constant 0 : i32
    return %arg0, %c0_i32 : i32, i32
  }
  func.func @transform_2(%arg0: i32, %arg1: i32) -> (i32, i32, i32) {
    %c0_i32 = arith.constant 0 : i32
    %c0_i32_0 = arith.constant 0 : i32
    return %arg1, %arg0, %c0_i32 : i32, i32, i32
  }
}

</mosaic_0001>

<llo_original>
// kernel: tpu_custom_call.1
$region0: #{tpu_custom_call.1}
  #allocation0 [shape = 'u32[]', space=smem, size = 0x4, offset = 0x4, fixed_abs, tag = 'smem constant byte address 0x4 - core index']
  #allocation1 [shape = 'u32[144,128]{1,0:T(1,128)}', space=vmem, size = 0x12000, scoped, tag = 'internal scratch']
  %s0 = inlined_call_operand.vmem [shape: f32[2,8,32], index: 0, kind: input, shape index: {}]
  %s1 = inlined_call_operand.vmem [shape: f32[80,32], index: 1, kind: input, shape index: {}]
  %s2 = inlined_call_operand.hbm [shape: f32[2,8,32], index: 2, kind: output, shape index: {}]
  %s3 = sld [smem:[#allocation0]]
  $region41: #{tpu_custom_call.1} parent=0
    _
  %s5 = ssub.s32 1, %s3
  %s6 = scalar_select 0, %s5, %s3
  $region1: #{tpu_custom_call.1} parent=0
    #allocation2 [shape = 'u8[8192]{0}', space=vmem, size = 0x2000, scoped, tag = 'output window, operand 0']
    #allocation3 [shape = 's32[2]{0}', space=sflag, size = 0x8, scoped, tag = 'scoped memory for tpu_custom_call.1']
    %7 = vsyncpa [#allocation3], 0
    %s8 = scalar_lea.sflag [#allocation3], 1
    %9 = vsyncpa %s8, 0
    loop: start=0, step=1, limit=4
    $region2: #{tpu_custom_call.1} parent=1 // loop_pre_header
      _
    $region3: #{tpu_custom_call.1} parent=1 // loop_header
      %s11 = sphi 0, %s15
      %p12 = scmp.ge.s32.totalorder %s11, 4
      %s18 = sphi 0, %s30
      %s19 = sphi 0, %s26
      %s20 = sphi 0, %s18
      %s21 = sphi 0, %s19
      %s22 = sphi 0, %s20
      %s23 = sphi 0, %s21
      %s35 = sphi 0, %s37
      %s38 = sphi 0, %s35
      %s39 = sphi 0, %s38
      %s55 = sphi 0, %s39
      %s61 = sphi 0, %s63
      %s64 = sphi 0, %s61
      %s65 = sphi 0, %s64
      %s81 = sphi 0, %s65
      %s89 = sphi 0, %s91
      %s92 = sphi 0, %s89
      %s93 = sphi 0, %s92
      %s109 = sphi 0, %s93
    $region4: #{tpu_custom_call.1} parent=1 // loop_header_branch
      %14 = sbr.rel (%p12) target = $region8
    $region5: #{tpu_custom_call.1} parent=1 // loop_body
      %s16 = ssub.s32 %s11, 1
      %s17 = ssub.s32 %s11, 2
      %s24 = sadd.s32 1, %s19
      %p25 = scmp.ge.s32.totalorder %s24, 2
      %s26 = scalar_select %p25, 0, %s24
      %s27 = sadd.s32 1, %s18
      %s28 = scalar_select %p25, %s27, %s18
      %p29 = scmp.ge.s32.totalorder %s28, 1
      %s30 = scalar_select %p29, 0, %s28
      %s31 = ssub.s32 %s19, %s26
      %s32 = ssub.s32 %s18, %s30
      %s33 = sor.u32 %s31, %s32
      %p34 = scmp.eq.s32.totalorder %s33, 0
      %s36 = sadd.s32 %s35, 1
      %s37 = scalar_select %p34, %s35, %s36
      %p40 = pneg %p34
      %p41 = scmp.eq.s32.totalorder %s11, 1
      %p42 = por %p40, %p41
      %p43 = scmp.ne.s32.totalorder %s35, %s38
      %p44 = scmp.eq.s32.totalorder %s11, 0
      %p45 = por %p43, %p44
      %p46 = scmp.ne.s32.totalorder %s35, %s38
      %p47 = scmp.eq.s32.totalorder %s16, 1
      %p48 = por %p46, %p47
      %p49 = scmp.ne.s32.totalorder %s38, %s39
      %p50 = scmp.eq.s32.totalorder %s16, 0
      %p51 = por %p49, %p50
      %p52 = scmp.ne.s32.totalorder %s38, %s39
      %p53 = scmp.eq.s32.totalorder %s17, 1
      %p54 = por %p52, %p53
      %p56 = scmp.ne.s32.totalorder %s39, %s55
      %p57 = scmp.eq.s32.totalorder %s17, 0
      %p58 = por %p56, %p57
      %s59 = ssub.s32 %s18, %s30
      %p60 = scmp.eq.s32.totalorder %s59, 0
      %s62 = sadd.s32 %s61, 1
      %s63 = scalar_select %p60, %s61, %s62
      %p66 = pneg %p60
      %p67 = scmp.eq.s32.totalorder %s11, 1
      %p68 = por %p66, %p67
      %p69 = scmp.ne.s32.totalorder %s61, %s64
      %p70 = scmp.eq.s32.totalorder %s11, 0
      %p71 = por %p69, %p70
      %p72 = scmp.ne.s32.totalorder %s61, %s64
      %p73 = scmp.eq.s32.totalorder %s16, 1
      %p74 = por %p72, %p73
      %p75 = scmp.ne.s32.totalorder %s64, %s65
      %p76 = scmp.eq.s32.totalorder %s16, 0
      %p77 = por %p75, %p76
      %p78 = scmp.ne.s32.totalorder %s64, %s65
      %p79 = scmp.eq.s32.totalorder %s17, 1
      %p80 = por %p78, %p79
      %p82 = scmp.ne.s32.totalorder %s65, %s81
      %p83 = scmp.eq.s32.totalorder %s17, 0
      %p84 = por %p82, %p83
      %s85 = ssub.s32 %s19, %s26
      %s86 = ssub.s32 %s18, %s30
      %s87 = sor.u32 %s85, %s86
      %p88 = scmp.eq.s32.totalorder %s87, 0
      %s90 = sadd.s32 %s89, 1
      %s91 = scalar_select %p88, %s89, %s90
      %p94 = pneg %p88
      %p95 = scmp.eq.s32.totalorder %s11, 1
      %p96 = por %p94, %p95
      %p97 = scmp.ne.s32.totalorder %s89, %s92
      %p98 = scmp.eq.s32.totalorder %s11, 0
      %p99 = por %p97, %p98
      %p100 = scmp.ne.s32.totalorder %s89, %s92
      %p101 = scmp.eq.s32.totalorder %s16, 1
      %p102 = por %p100, %p101
      %p103 = scmp.ne.s32.totalorder %s92, %s93
      %p104 = scmp.eq.s32.totalorder %s16, 0
      %p105 = por %p103, %p104
      %p106 = scmp.ne.s32.totalorder %s92, %s93
      %p107 = scmp.eq.s32.totalorder %s17, 1
      %p108 = por %p106, %p107
      %p110 = scmp.ne.s32.totalorder %s93, %s109
      %p111 = scmp.eq.s32.totalorder %s17, 0
      %p112 = por %p110, %p111
      %p113 = scmp.le.s32.totalorder 1, %s11
      %p114 = scmp.lt.s32.totalorder %s11, 3
      %p115 = pnand %p113, %p114
      %p116 = pneg %p115
      // Predicated region
      $region9: #{tpu_custom_call.1} parent=5 // pred_check
        _
      $region10: #{tpu_custom_call.1} parent=5 // pred_check_branch
        %118 = sbr.rel (%p115) target = $region12
      $region11: #{tpu_custom_call.1} parent=5 // pred_region
        %s119 = ssub.s32 %s11, 1
        // Predicated region
        $region13: #{tpu_custom_call.1} parent=11 // pred_check
          %p120 = pneg %p77
        $region14: #{tpu_custom_call.1} parent=11 // pred_check_branch
          %122 = sbr.rel (%p120) target = $region16
        $region15: #{tpu_custom_call.1} parent=11 // pred_region
          %p123 = scmp.lt.s32.totalorder %s20, 9
          %s124 = scalar_select %p123, %s20, 9
          %s125 = smul.addr %s124, 8
          %s126 = scalar_lea.vmem %s1, %s125
        $region16: #{tpu_custom_call.1} parent=11 // pred_fallthru
          _
      $region12: #{tpu_custom_call.1} parent=5 // pred_fallthru
        _
      %p127 = scmp.lt.s32.totalorder %s11, 2
      // Predicated region
      $region17: #{tpu_custom_call.1} parent=5 // pred_check
        %p128 = pneg %p127
      $region18: #{tpu_custom_call.1} parent=5 // pred_check_branch
        %130 = sbr.rel (%p128) target = $region20
      $region19: #{tpu_custom_call.1} parent=5 // pred_region
        // Predicated region
        $region21: #{tpu_custom_call.1} parent=19 // pred_check
          %p131 = pneg %p45
        $region22: #{tpu_custom_call.1} parent=19 // pred_check_branch
          %133 = sbr.rel (%p131) target = $region24
        $region23: #{tpu_custom_call.1} parent=19 // pred_region
          %p134 = scmp.lt.s32.totalorder %s19, 1
          %s135 = scalar_select %p134, %s19, 1
          %p136 = scmp.lt.s32.totalorder %s18, 0
          %s137 = scalar_select %p136, %s18, 0
          %s138 = sadd.s32 %s137, %s135
          %s139 = smul.addr %s138, 8
          %s140 = scalar_lea.vmem %s0, %s139
        $region24: #{tpu_custom_call.1} parent=19 // pred_fallthru
          _
      $region20: #{tpu_custom_call.1} parent=5 // pred_fallthru
        _
      %p141 = scmp.le.s32.totalorder 1, %s11
      %p142 = scmp.lt.s32.totalorder %s11, 3
      %p143 = pnand %p141, %p142
      %p144 = pneg %p143
      // Predicated region
      $region25: #{tpu_custom_call.1} parent=5 // pred_check
        _
      $region26: #{tpu_custom_call.1} parent=5 // pred_check_branch
        %146 = sbr.rel (%p143) target = $region28
      $region27: #{tpu_custom_call.1} parent=5 // pred_region
        %s147 = ssub.s32 %s11, 1
        %p148 = scmp.lt.s32.totalorder %s21, 1
        %s149 = scalar_select %p148, %s21, 1
        %p150 = scmp.lt.s32.totalorder %s20, 0
        %s151 = scalar_select %p150, %s20, 0
        %s152 = sadd.s32 %s151, %s149
        %s153 = smul.addr %s152, 8
        %s154 = scalar_lea.vmem %s0, %s153
        %p155 = pneg %p51
        %p156 = pneg %p48
        %p157 = scmp.lt.s32.totalorder %s20, 9
        %s158 = scalar_select %p157, %s20, 9
        %s159 = smul.addr %s158, 8
        %s160 = scalar_lea.vmem %s1, %s159
        %p161 = pneg %p77
        %p162 = pneg %p74
        %p163 = pneg %p105
        %p164 = pneg %p102
        %s165 = sand.u32 %s92, 1
        %s166 = scalar_lea.sflag [#allocation3], %s165
        %s167 = sand.u32 %s92, 1
        %s168 = smul.addr %s167, 8
        %s169 = scalar_lea.vmem [#allocation2], %s168
        %p170 = scmp.lt.s32.totalorder %s21, 1
        %s171 = scalar_select %p170, %s21, 1
        %p172 = scmp.lt.s32.totalorder %s20, 0
        %s173 = scalar_select %p172, %s20, 0
        %s174 = sadd.s32 %s173, %s171
        %s175 = smul.addr %s174, 8
        %s176 = scalar_lea.vmem %s0, %s175
        %p177 = scmp.lt.s32.totalorder %s20, 9
        %s178 = scalar_select %p177, %s20, 9
        %s179 = smul.addr %s178, 8
        %s180 = scalar_lea.vmem %s1, %s179
        %v181 = vld [vmem:[%s176] sm:$0xff]
        %v182 = vmul.f32 %v181, 5.656854
        %v183 = vld [vmem:[%s180] sm:$0xff]
        %v184 = vadd.f32 %v182, %v183
        %vm185 = vcmask 261120
        %186 = vst.msk [vmem:[%s169] sm:$0xff] %vm185, %v184
        %s187 = sand.u32 %s92, 1
        %s188 = scalar_lea.sflag [#allocation3], %s187
        %s189 = sand.u32 %s92, 1
        %s190 = smul.addr %s189, 8
        %s191 = scalar_lea.vmem [#allocation2], %s190
        // Predicated region
        $region29: #{tpu_custom_call.1} parent=27 // pred_check
          %p192 = pneg %p102
        $region30: #{tpu_custom_call.1} parent=27 // pred_check_branch
          %194 = sbr.rel (%p192) target = $region32
        $region31: #{tpu_custom_call.1} parent=27 // pred_region
          %s196 = ssub.s32 128, 128
          %197 = vsyncadd %s188, %s196
          %s198 = sadd.s32 %s20, %s21
          %s199 = smul.addr %s198, 128
          %s200 = scalar_lea.hbm %s2, %s199
          %s202 = sshll.u32 %s191, 4
          %s203 = int_to_ptr.vmem [resolvable:$true] %s202
          %205 = dma.vmem_to_hbm [thread:$0]  %s203, 128, %s200, %s188
        $region32: #{tpu_custom_call.1} parent=27 // pred_fallthru
          _
      $region28: #{tpu_custom_call.1} parent=5 // pred_fallthru
        _
      %p206 = scmp.le.s32.totalorder 2, %s11
      // Predicated region
      $region33: #{tpu_custom_call.1} parent=5 // pred_check
        %p207 = pneg %p206
      $region34: #{tpu_custom_call.1} parent=5 // pred_check_branch
        %209 = sbr.rel (%p207) target = $region36
      $region35: #{tpu_custom_call.1} parent=5 // pred_region
        %s210 = ssub.s32 %s11, 2
        // Predicated region
        $region37: #{tpu_custom_call.1} parent=35 // pred_check
          %p211 = pneg %p108
        $region38: #{tpu_custom_call.1} parent=35 // pred_check_branch
          %213 = sbr.rel (%p211) target = $region40
        $region39: #{tpu_custom_call.1} parent=35 // pred_region
          %s214 = sand.u32 %s93, 1
          %s215 = scalar_lea.sflag [#allocation3], %s214
          %s216 = sand.u32 %s93, 1
          %s217 = smul.addr %s216, 8
          %s218 = scalar_lea.vmem [#allocation2], %s217
          %219 = dma.done %s215, 128
        $region40: #{tpu_custom_call.1} parent=35 // pred_fallthru
          _
      $region36: #{tpu_custom_call.1} parent=5 // pred_fallthru
        _
    $region6: #{tpu_custom_call.1} parent=1 // loop_footer
      %s15 = sadd.s32 1, %s11
    $region7: #{tpu_custom_call.1} parent=1 // loop_footer_branch
      %10 = sbr.rel target = $region3
    $region8: #{tpu_custom_call.1} parent=1 // loop_exit
      _
    %220 = vsyncpa [#allocation3], 1
    %s221 = scalar_lea.sflag [#allocation3], 1
    %222 = vsyncpa %s221, 1

</llo_original>
